<compile_context>
chip_gen: v7x
topology: tpu7x:2x2x1
jax: 0.10.0
libtpu: 0.0.40
codegen_flags: <defaults>
</compile_context>

<pallas_src>
import jax
import jax.numpy as jnp
from jax.experimental import pallas as pl
from jax.experimental.pallas import tpu as pltpu


# ----------------------------------------------------------------------------
# Kernel: per (1, tile) slab of flattened rows, compute mu / sigma / log-pi.
# ----------------------------------------------------------------------------
def melnet_kernel(xt_ref, xf_ref,
                  ctm_ref, cfm_ref, cbm_ref,
                  cts_ref, cfs_ref, cbs_ref,
                  ctp_ref, cfp_ref, cbp_ref,
                  mu_ref, sigma_ref, pi_ref):
    xt = xt_ref[...]                      # (1, tile)  lane-dense input row
    xf = xf_ref[...]                      # (1, tile)

    def affine(ct_ref, cf_ref, cb_ref):
        # (n_mix, 1) constants broadcast against the (1, tile) input rows.
        return xt * ct_ref[...] + xf * cf_ref[...] + cb_ref[...]   # (n_mix, tile)

    # mu head
    mu_ref[...] = affine(ctm_ref, cfm_ref, cbm_ref)

    # sigma head (exp in f32)
    sigma_ref[...] = jnp.exp(affine(cts_ref, cfs_ref, cbs_ref))

    # pi head: log_softmax over the mixture (sublane) axis
    logits = affine(ctp_ref, cfp_ref, cbp_ref)                     # (n_mix, tile)
    m = jnp.max(logits, axis=0, keepdims=True)
    z = logits - m
    lse = jnp.log(jnp.sum(jnp.exp(z), axis=0, keepdims=True))
    pi_ref[...] = z - lse


# ----------------------------------------------------------------------------
# Wrapper
# ----------------------------------------------------------------------------
def _collapse_params(params, n_mixtures):
    """Fold Linear(1, D) -> [identity Layer stack] -> Linear(2D, 3*n_mix) into
    per-head (n_mix, 1) constant vectors:  out = xt*c_t + xf*c_f + c_b."""
    w_t, b_t = params["w_time"], params["b_time"]       # (1, D), (1, D)
    w_f, b_f = params["w_freq"], params["b_freq"]       # (1, D), (1, D)

    def head(wt, wf, b):
        c_t = w_t @ wt                                   # (1, n_mix)
        c_f = w_f @ wf                                   # (1, n_mix)
        c_b = b_t @ wt + b_f @ wf + b                    # (1, n_mix)
        return c_t.T, c_f.T, c_b.T                       # each (n_mix, 1)

    ctm, cfm, cbm = head(params["wt_mu"], params["wf_mu"], params["b_mu"])
    cts, cfs, cbs = head(params["wt_sigma"], params["wf_sigma"], params["b_sigma"])
    ctp, cfp, cbp = head(params["wt_pi"], params["wf_pi"], params["b_pi"])
    return (ctm, cfm, cbm, cts, cfs, cbs, ctp, cfp, cbp)


def melnet_forward(x, params, n_mixtures, tile_n=2048):
    """x: (B, T, M) float32. Returns (mu, sigma, pi) each (B, T, M, n_mixtures)."""
    B, T, M = x.shape
    x = x.astype(jnp.float32)

    # F.pad(x, [0, 0, 1, -1, 0, 0]): shift by one along dim -2 (T), zero-fill front.
    x_time = jnp.pad(x, ((0, 0), (1, 0), (0, 0)))[:, :-1, :]
    # F.pad(x, [0, 0, 0, 0, 1, -1]): shift by one along dim -3 (B), zero-fill front
    # (reproduced literally from the reference code).
    x_freq = jnp.pad(x, ((1, 0), (0, 0), (0, 0)))[:-1, :, :]

    # TODO(synk): `Layer(dims, hook)` is not defined in the reference source;
    # the `self.layers` stack is treated as an identity pass-through. The
    # rank-1 collapse below is exact only under that assumption.

    N = B * T * M

    # Lane-dense tiling: N is the 128-lane axis. Clamp tile for tiny inputs.
    tile_n = max(128, (int(tile_n) // 128) * 128)
    tile_n = min(tile_n, ((N + 127) // 128) * 128)
    n_tiles = pl.cdiv(N, tile_n)
    N_pad = n_tiles * tile_n

    xt = x_time.reshape(-1)
    xf = x_freq.reshape(-1)
    if N_pad != N:
        xt = jnp.pad(xt, (0, N_pad - N))
        xf = jnp.pad(xf, (0, N_pad - N))
    xt = xt.reshape(1, N_pad)
    xf = xf.reshape(1, N_pad)

    consts = _collapse_params(params, n_mixtures)

    row_spec = pl.BlockSpec((1, tile_n), lambda i: (0, i))
    const_spec = pl.BlockSpec((n_mixtures, 1), lambda i: (0, 0))
    out_spec = pl.BlockSpec((n_mixtures, tile_n), lambda i: (0, i))

    in_specs = [row_spec, row_spec] + [const_spec] * 9
    out_specs = [out_spec, out_spec, out_spec]
    out_shape = [jax.ShapeDtypeStruct((n_mixtures, N_pad), jnp.float32)] * 3

    mu, sigma, pi = pl.pallas_call(
        melnet_kernel,
        grid=(n_tiles,),
        in_specs=in_specs,
        out_specs=out_specs,
        out_shape=out_shape,
        compiler_params=pltpu.CompilerParams(dimension_semantics=("parallel",)),
    )(xt, xf, *consts)

    def unflatten(a):
        # (n_mix, N_pad) -> (B, T, M, n_mix)
        return a[:, :N].T.reshape(B, T, M, n_mixtures)

    return unflatten(mu), unflatten(sigma), unflatten(pi)


# ----------------------------------------------------------------------------
# Parameters (shapes mirror the PyTorch module; fc_out split matches the
# reshape(B, T, M, n_mix, 3) convention: param k uses rows k::3 of fc_out.W)
# ----------------------------------------------------------------------------
def init_params(key, dims, n_mixtures):
    ks = jax.random.split(key, 6)
    # time_input / freq_input : nn.Linear(1, dims) -> weight (dims, 1), bias (dims,)
    w_time = (0.1 * jax.random.normal(ks[0], (dims, 1))).T.astype(jnp.float32)   # (1, D)
    b_time = (0.1 * jax.random.normal(ks[1], (1, dims))).astype(jnp.float32)     # (1, D)
    w_freq = (0.1 * jax.random.normal(ks[2], (dims, 1))).T.astype(jnp.float32)
    b_freq = (0.1 * jax.random.normal(ks[3], (1, dims))).astype(jnp.float32)
    # fc_out : nn.Linear(2*dims, 3*n_mixtures) -> weight (3*n_mix, 2*dims), bias (3*n_mix,)
    W_out = (0.1 * jax.random.normal(ks[4], (3 * n_mixtures, 2 * dims))).astype(jnp.float32)
    b_out = (0.1 * jax.random.normal(ks[5], (3 * n_mixtures,))).astype(jnp.float32)

    def split_head(k):
        Wk = W_out[k::3, :]                       # rows for mixture-param k
        return (Wk[:, :dims].T,                   # (D, n_mix) acting on the time half
                Wk[:, dims:].T,                   # (D, n_mix) acting on the freq half
                b_out[k::3].reshape(1, n_mixtures))

    wt_mu, wf_mu, b_mu = split_head(0)
    wt_sigma, wf_sigma, b_sigma = split_head(1)
    wt_pi, wf_pi, b_pi = split_head(2)

    return dict(
        w_time=w_time, b_time=b_time, w_freq=w_freq, b_freq=b_freq,
        wt_mu=wt_mu, wf_mu=wf_mu, b_mu=b_mu,
        wt_sigma=wt_sigma, wf_sigma=wf_sigma, b_sigma=b_sigma,
        wt_pi=wt_pi, wf_pi=wf_pi, b_pi=b_pi,
    )


# ----------------------------------------------------------------------------
# Pure-JAX reference (un-collapsed path) for a correctness check.
# ----------------------------------------------------------------------------
def melnet_reference(x, params, n_mixtures):
    B, T, M = x.shape
    x = x.astype(jnp.float32)
    x_time = jnp.pad(x, ((0, 0), (1, 0), (0, 0)))[:, :-1, :].reshape(-1, 1)
    x_freq = jnp.pad(x, ((1, 0), (0, 0), (0, 0)))[:-1, :, :].reshape(-1, 1)

    h_t = x_time * params["w_time"] + params["b_time"]
    h_f = x_freq * params["w_freq"] + params["b_freq"]

    def head(wt, wf, b):
        return h_t @ wt + h_f @ wf + b

    mu = head(params["wt_mu"], params["wf_mu"], params["b_mu"])
    sigma = jnp.exp(head(params["wt_sigma"], params["wf_sigma"], params["b_sigma"]))
    logits = head(params["wt_pi"], params["wf_pi"], params["b_pi"])
    pi = jax.nn.log_softmax(logits, axis=-1)

    rs = lambda a: a.reshape(B, T, M, n_mixtures)
    return rs(mu), rs(sigma), rs(pi)


if __name__ == "__main__":
    B, T, M = 2, 8, 16        # batch, time frames, mel bins
    dims = 32                 # hidden dims
    n_mixtures = 10

    key = jax.random.PRNGKey(0)
    k_x, k_p = jax.random.split(key)
    x = jax.random.normal(k_x, (B, T, M), dtype=jnp.float32)
    params = init_params(k_p, dims, n_mixtures)

    mu, sigma, pi = melnet_forward(x, params, n_mixtures)
    jax.block_until_ready((mu, sigma, pi))

    assert mu.shape == (B, T, M, n_mixtures)
    assert sigma.shape == (B, T, M, n_mixtures)
    assert pi.shape == (B, T, M, n_mixtures)

    # Numerical check against the un-collapsed pure-JAX reference.
    mu_r, sigma_r, pi_r = melnet_reference(x, params, n_mixtures)
    assert jnp.allclose(mu, mu_r, atol=1e-4, rtol=1e-4)
    assert jnp.allclose(sigma, sigma_r, atol=1e-4, rtol=1e-4)
    assert jnp.allclose(pi, pi_r, atol=1e-4, rtol=1e-4)

    print("KERNEL_OK")
</pallas_src>

<mosaic_0001>
module attributes {stable_mosaic.version = 11 : i64} {
  func.func @melnet_kernel(%arg0: i32, %arg1: memref<1x256xf32, #tpu.memory_space<vmem>>, %arg2: memref<1x256xf32, #tpu.memory_space<vmem>>, %arg3: memref<10x1xf32, #tpu.memory_space<vmem>>, %arg4: memref<10x1xf32, #tpu.memory_space<vmem>>, %arg5: memref<10x1xf32, #tpu.memory_space<vmem>>, %arg6: memref<10x1xf32, #tpu.memory_space<vmem>>, %arg7: memref<10x1xf32, #tpu.memory_space<vmem>>, %arg8: memref<10x1xf32, #tpu.memory_space<vmem>>, %arg9: memref<10x1xf32, #tpu.memory_space<vmem>>, %arg10: memref<10x1xf32, #tpu.memory_space<vmem>>, %arg11: memref<10x1xf32, #tpu.memory_space<vmem>>, %arg12: memref<10x256xf32, #tpu.memory_space<vmem>>, %arg13: memref<10x256xf32, #tpu.memory_space<vmem>>, %arg14: memref<10x256xf32, #tpu.memory_space<vmem>>) attributes {dimension_semantics = [#tpu.dimension_semantics<parallel>], iteration_bounds = array<i64: 1>, scalar_prefetch = 0 : i64, scratch_operands = 0 : i64, tpu.core_type = #tpu.core_type<tc>, window_params = [{transform_indices = @transform_0, window_bounds = array<i64: 1, 256>}, {transform_indices = @transform_1, window_bounds = array<i64: 1, 256>}, {pipeline_mode = #tpu.pipeline_mode<synchronous>, transform_indices = @transform_2, window_bounds = array<i64: 10, 1>}, {pipeline_mode = #tpu.pipeline_mode<synchronous>, transform_indices = @transform_3, window_bounds = array<i64: 10, 1>}, {pipeline_mode = #tpu.pipeline_mode<synchronous>, transform_indices = @transform_4, window_bounds = array<i64: 10, 1>}, {pipeline_mode = #tpu.pipeline_mode<synchronous>, transform_indices = @transform_5, window_bounds = array<i64: 10, 1>}, {pipeline_mode = #tpu.pipeline_mode<synchronous>, transform_indices = @transform_6, window_bounds = array<i64: 10, 1>}, {pipeline_mode = #tpu.pipeline_mode<synchronous>, transform_indices = @transform_7, window_bounds = array<i64: 10, 1>}, {pipeline_mode = #tpu.pipeline_mode<synchronous>, transform_indices = @transform_8, window_bounds = array<i64: 10, 1>}, {pipeline_mode = #tpu.pipeline_mode<synchronous>, transform_indices = @transform_9, window_bounds = array<i64: 10, 1>}, {pipeline_mode = #tpu.pipeline_mode<synchronous>, transform_indices = @transform_10, window_bounds = array<i64: 10, 1>}, {transform_indices = @transform_11, window_bounds = array<i64: 10, 256>}, {transform_indices = @transform_12, window_bounds = array<i64: 10, 256>}, {transform_indices = @transform_13, window_bounds = array<i64: 10, 256>}]} {
    %c0 = arith.constant 0 : index
    %c0_0 = arith.constant 0 : index
    %0 = vector.load %arg1[%c0, %c0_0] : memref<1x256xf32, #tpu.memory_space<vmem>>, vector<1x256xf32>
    %c0_1 = arith.constant 0 : index
    %c0_2 = arith.constant 0 : index
    %1 = vector.load %arg2[%c0_1, %c0_2] : memref<1x256xf32, #tpu.memory_space<vmem>>, vector<1x256xf32>
    %c0_3 = arith.constant 0 : index
    %c0_4 = arith.constant 0 : index
    %2 = vector.load %arg3[%c0_3, %c0_4] : memref<10x1xf32, #tpu.memory_space<vmem>>, vector<10x1xf32>
    %3 = vector.broadcast %0 : vector<1x256xf32> to vector<10x256xf32>
    %4 = vector.broadcast %2 : vector<10x1xf32> to vector<10x256xf32>
    %5 = arith.mulf %3, %4 : vector<10x256xf32>
    %c0_5 = arith.constant 0 : index
    %c0_6 = arith.constant 0 : index
    %6 = vector.load %arg4[%c0_5, %c0_6] : memref<10x1xf32, #tpu.memory_space<vmem>>, vector<10x1xf32>
    %7 = vector.broadcast %1 : vector<1x256xf32> to vector<10x256xf32>
    %8 = vector.broadcast %6 : vector<10x1xf32> to vector<10x256xf32>
    %9 = arith.mulf %7, %8 : vector<10x256xf32>
    %10 = arith.addf %5, %9 : vector<10x256xf32>
    %c0_7 = arith.constant 0 : index
    %c0_8 = arith.constant 0 : index
    %11 = vector.load %arg5[%c0_7, %c0_8] : memref<10x1xf32, #tpu.memory_space<vmem>>, vector<10x1xf32>
    %12 = vector.broadcast %11 : vector<10x1xf32> to vector<10x256xf32>
    %13 = arith.addf %10, %12 : vector<10x256xf32>
    %c0_9 = arith.constant 0 : index
    %c0_10 = arith.constant 0 : index
    %14 = vector.load %arg12[%c0_9, %c0_10] : memref<10x256xf32, #tpu.memory_space<vmem>>, vector<10x256xf32>
    tpu.vector_store %arg12[%c0_9, %c0_10], %13 {strides = array<i32>} : memref<10x256xf32, #tpu.memory_space<vmem>>, vector<10x256xf32>,
    %c0_11 = arith.constant 0 : index
    %c0_12 = arith.constant 0 : index
    %15 = vector.load %arg6[%c0_11, %c0_12] : memref<10x1xf32, #tpu.memory_space<vmem>>, vector<10x1xf32>
    %16 = vector.broadcast %0 : vector<1x256xf32> to vector<10x256xf32>
    %17 = vector.broadcast %15 : vector<10x1xf32> to vector<10x256xf32>
    %18 = arith.mulf %16, %17 : vector<10x256xf32>
    %c0_13 = arith.constant 0 : index
    %c0_14 = arith.constant 0 : index
    %19 = vector.load %arg7[%c0_13, %c0_14] : memref<10x1xf32, #tpu.memory_space<vmem>>, vector<10x1xf32>
    %20 = vector.broadcast %1 : vector<1x256xf32> to vector<10x256xf32>
    %21 = vector.broadcast %19 : vector<10x1xf32> to vector<10x256xf32>
    %22 = arith.mulf %20, %21 : vector<10x256xf32>
    %23 = arith.addf %18, %22 : vector<10x256xf32>
    %c0_15 = arith.constant 0 : index
    %c0_16 = arith.constant 0 : index
    %24 = vector.load %arg8[%c0_15, %c0_16] : memref<10x1xf32, #tpu.memory_space<vmem>>, vector<10x1xf32>
    %25 = vector.broadcast %24 : vector<10x1xf32> to vector<10x256xf32>
    %26 = arith.addf %23, %25 : vector<10x256xf32>
    %27 = math.exp %26 : vector<10x256xf32>
    %c0_17 = arith.constant 0 : index
    %c0_18 = arith.constant 0 : index
    %28 = vector.load %arg13[%c0_17, %c0_18] : memref<10x256xf32, #tpu.memory_space<vmem>>, vector<10x256xf32>
    tpu.vector_store %arg13[%c0_17, %c0_18], %27 {strides = array<i32>} : memref<10x256xf32, #tpu.memory_space<vmem>>, vector<10x256xf32>,
    %c0_19 = arith.constant 0 : index
    %c0_20 = arith.constant 0 : index
    %29 = vector.load %arg9[%c0_19, %c0_20] : memref<10x1xf32, #tpu.memory_space<vmem>>, vector<10x1xf32>
    %30 = vector.broadcast %0 : vector<1x256xf32> to vector<10x256xf32>
    %31 = vector.broadcast %29 : vector<10x1xf32> to vector<10x256xf32>
    %32 = arith.mulf %30, %31 : vector<10x256xf32>
    %c0_21 = arith.constant 0 : index
    %c0_22 = arith.constant 0 : index
    %33 = vector.load %arg10[%c0_21, %c0_22] : memref<10x1xf32, #tpu.memory_space<vmem>>, vector<10x1xf32>
    %34 = vector.broadcast %1 : vector<1x256xf32> to vector<10x256xf32>
    %35 = vector.broadcast %33 : vector<10x1xf32> to vector<10x256xf32>
    %36 = arith.mulf %34, %35 : vector<10x256xf32>
    %37 = arith.addf %32, %36 : vector<10x256xf32>
    %c0_23 = arith.constant 0 : index
    %c0_24 = arith.constant 0 : index
    %38 = vector.load %arg11[%c0_23, %c0_24] : memref<10x1xf32, #tpu.memory_space<vmem>>, vector<10x1xf32>
    %39 = vector.broadcast %38 : vector<10x1xf32> to vector<10x256xf32>
    %40 = arith.addf %37, %39 : vector<10x256xf32>
    %cst = arith.constant dense<0xFF800000> : vector<256xf32>
    %41 = vector.multi_reduction <maximumf>, %40, %cst [0] : vector<10x256xf32> to vector<256xf32>
    %42 = vector.shape_cast %41 : vector<256xf32> to vector<1x256xf32>
    %43 = vector.broadcast %42 : vector<1x256xf32> to vector<10x256xf32>
    %44 = arith.subf %40, %43 : vector<10x256xf32>
    %45 = math.exp %44 : vector<10x256xf32>
    %cst_25 = arith.constant dense<0.000000e+00> : vector<256xf32>
    %46 = vector.multi_reduction <add>, %45, %cst_25 [0] : vector<10x256xf32> to vector<256xf32>
    %47 = vector.shape_cast %46 : vector<256xf32> to vector<1x256xf32>
    %48 = math.log %47 : vector<1x256xf32>
    %49 = vector.broadcast %48 : vector<1x256xf32> to vector<10x256xf32>
    %50 = arith.subf %44, %49 : vector<10x256xf32>
    %c0_26 = arith.constant 0 : index
    %c0_27 = arith.constant 0 : index
    %51 = vector.load %arg14[%c0_26, %c0_27] : memref<10x256xf32, #tpu.memory_space<vmem>>, vector<10x256xf32>
    tpu.vector_store %arg14[%c0_26, %c0_27], %50 {strides = array<i32>} : memref<10x256xf32, #tpu.memory_space<vmem>>, vector<10x256xf32>,
    return
  }
  func.func @transform_0(%arg0: i32) -> (i32, i32) {
    %c0_i32 = arith.constant 0 : i32
    %c0_i32_0 = arith.constant 0 : i32
    return %c0_i32, %arg0 : i32, i32
  }
  func.func @transform_1(%arg0: i32) -> (i32, i32) {
    %c0_i32 = arith.constant 0 : i32
    %c0_i32_0 = arith.constant 0 : i32
    return %c0_i32, %arg0 : i32, i32
  }
  func.func @transform_2(%arg0: i32) -> (i32, i32) {
    %c0_i32 = arith.constant 0 : i32
    %c0_i32_0 = arith.constant 0 : i32
    %c0_i32_1 = arith.constant 0 : i32
    return %c0_i32, %c0_i32_0 : i32, i32
  }
  func.func @transform_3(%arg0: i32) -> (i32, i32) {
    %c0_i32 = arith.constant 0 : i32
    %c0_i32_0 = arith.constant 0 : i32
    %c0_i32_1 = arith.constant 0 : i32
    return %c0_i32, %c0_i32_0 : i32, i32
  }
  func.func @transform_4(%arg0: i32) -> (i32, i32) {
    %c0_i32 = arith.constant 0 : i32
    %c0_i32_0 = arith.constant 0 : i32
    %c0_i32_1 = arith.constant 0 : i32
    return %c0_i32, %c0_i32_0 : i32, i32
  }
  func.func @transform_5(%arg0: i32) -> (i32, i32) {
    %c0_i32 = arith.constant 0 : i32
    %c0_i32_0 = arith.constant 0 : i32
    %c0_i32_1 = arith.constant 0 : i32
    return %c0_i32, %c0_i32_0 : i32, i32
  }
  func.func @transform_6(%arg0: i32) -> (i32, i32) {
    %c0_i32 = arith.constant 0 : i32
    %c0_i32_0 = arith.constant 0 : i32
    %c0_i32_1 = arith.constant 0 : i32
    return %c0_i32, %c0_i32_0 : i32, i32
  }
  func.func @transform_7(%arg0: i32) -> (i32, i32) {
    %c0_i32 = arith.constant 0 : i32
    %c0_i32_0 = arith.constant 0 : i32
    %c0_i32_1 = arith.constant 0 : i32
    return %c0_i32, %c0_i32_0 : i32, i32
  }
  func.func @transform_8(%arg0: i32) -> (i32, i32) {
    %c0_i32 = arith.constant 0 : i32
    %c0_i32_0 = arith.constant 0 : i32
    %c0_i32_1 = arith.constant 0 : i32
    return %c0_i32, %c0_i32_0 : i32, i32
  }
  func.func @transform_9(%arg0: i32) -> (i32, i32) {
    %c0_i32 = arith.constant 0 : i32
    %c0_i32_0 = arith.constant 0 : i32
    %c0_i32_1 = arith.constant 0 : i32
    return %c0_i32, %c0_i32_0 : i32, i32
  }
  func.func @transform_10(%arg0: i32) -> (i32, i32) {
    %c0_i32 = arith.constant 0 : i32
    %c0_i32_0 = arith.constant 0 : i32
    %c0_i32_1 = arith.constant 0 : i32
    return %c0_i32, %c0_i32_0 : i32, i32
  }
  func.func @transform_11(%arg0: i32) -> (i32, i32) {
    %c0_i32 = arith.constant 0 : i32
    %c0_i32_0 = arith.constant 0 : i32
    return %c0_i32, %arg0 : i32, i32
  }
  func.func @transform_12(%arg0: i32) -> (i32, i32) {
    %c0_i32 = arith.constant 0 : i32
    %c0_i32_0 = arith.constant 0 : i32
    return %c0_i32, %arg0 : i32, i32
  }
  func.func @transform_13(%arg0: i32) -> (i32, i32) {
    %c0_i32 = arith.constant 0 : i32
    %c0_i32_0 = arith.constant 0 : i32
    return %c0_i32, %arg0 : i32, i32
  }
}

</mosaic_0001>

<llo_original>
// kernel: tpu_custom_call.1
$region0: #{tpu_custom_call.1}
  #allocation0 [shape = 'u32[]', space=smem, size = 0x4, offset = 0x4, fixed_abs, tag = 'smem constant byte address 0x4 - core index']
  #allocation1 [shape = 'u32[144,128]{1,0:T(1,128)}', space=vmem, size = 0x12000, scoped, tag = 'internal scratch']
  %s0 = inlined_call_operand.vmem [shape: f32[1,256], index: 0, kind: input, shape index: {}]
  %s1 = inlined_call_operand.vmem [shape: f32[1,256], index: 1, kind: input, shape index: {}]
  %s2 = inlined_call_operand.vmem [shape: f32[10,1], index: 2, kind: input, shape index: {}]
  %s3 = inlined_call_operand.vmem [shape: f32[10,1], index: 3, kind: input, shape index: {}]
  %s4 = inlined_call_operand.vmem [shape: f32[10,1], index: 4, kind: input, shape index: {}]
  %s5 = inlined_call_operand.vmem [shape: f32[10,1], index: 5, kind: input, shape index: {}]
  %s6 = inlined_call_operand.vmem [shape: f32[10,1], index: 6, kind: input, shape index: {}]
  %s7 = inlined_call_operand.vmem [shape: f32[10,1], index: 7, kind: input, shape index: {}]
  %s8 = inlined_call_operand.vmem [shape: f32[10,1], index: 8, kind: input, shape index: {}]
  %s9 = inlined_call_operand.vmem [shape: f32[10,1], index: 9, kind: input, shape index: {}]
  %s10 = inlined_call_operand.vmem [shape: f32[10,1], index: 10, kind: input, shape index: {}]
  %s11 = inlined_call_operand.hbm [shape: f32[10,256], index: 11, kind: output, shape index: {0}]
  %s12 = inlined_call_operand.hbm [shape: f32[10,256], index: 12, kind: output, shape index: {1}]
  %s13 = inlined_call_operand.hbm [shape: f32[10,256], index: 13, kind: output, shape index: {2}]
  %14 = xla_tuple %s11, %s12, %s13
  %s15 = sld [smem:[#allocation0]]
  $region70: #{tpu_custom_call.1} parent=0
    _
  %s17 = ssub.s32 1, %s15
  %s18 = scalar_select 0, %s17, %s15
  $region1: #{tpu_custom_call.1} parent=0
    #allocation2 [shape = 'u8[16384]{0}', space=vmem, size = 0x4000, scoped, tag = 'output window, operand 0, single buffered']
    #allocation3 [shape = 's32[1]{0}', space=sflag, size = 0x4, scoped, tag = 'scoped memory for tpu_custom_call.1']
    #allocation4 [shape = 'u8[16384]{0}', space=vmem, size = 0x4000, scoped, tag = 'output window, operand 1, single buffered']
    #allocation5 [shape = 's32[1]{0}', space=sflag, size = 0x4, scoped, tag = 'scoped memory for tpu_custom_call.1']
    #allocation6 [shape = 'u8[16384]{0}', space=vmem, size = 0x4000, scoped, tag = 'output window, operand 2, single buffered']
    %19 = vsyncpa [#allocation3], 0
    %20 = vsyncpa [#allocation5], 0
    // Predicated region
    $region2: #{tpu_custom_call.1} parent=1 // pred_check
      _
    $region3: #{tpu_custom_call.1} parent=1 // pred_check_branch
      %22 = sbr.rel (0) target = $region5
    $region4: #{tpu_custom_call.1} parent=1 // pred_region
      _
    $region5: #{tpu_custom_call.1} parent=1 // pred_fallthru
      _
    // Predicated region
    $region6: #{tpu_custom_call.1} parent=1 // pred_check
      _
    $region7: #{tpu_custom_call.1} parent=1 // pred_check_branch
      %24 = sbr.rel (0) target = $region9
    $region8: #{tpu_custom_call.1} parent=1 // pred_region
      _
    $region9: #{tpu_custom_call.1} parent=1 // pred_fallthru
      _
    // Predicated region
    $region10: #{tpu_custom_call.1} parent=1 // pred_check
      _
    $region11: #{tpu_custom_call.1} parent=1 // pred_check_branch
      %26 = sbr.rel (0) target = $region13
    $region12: #{tpu_custom_call.1} parent=1 // pred_region
      _
    $region13: #{tpu_custom_call.1} parent=1 // pred_fallthru
      _
    // Predicated region
    $region14: #{tpu_custom_call.1} parent=1 // pred_check
      _
    $region15: #{tpu_custom_call.1} parent=1 // pred_check_branch
      %28 = sbr.rel (0) target = $region17
    $region16: #{tpu_custom_call.1} parent=1 // pred_region
      _
    $region17: #{tpu_custom_call.1} parent=1 // pred_fallthru
      _
    // Predicated region
    $region18: #{tpu_custom_call.1} parent=1 // pred_check
      _
    $region19: #{tpu_custom_call.1} parent=1 // pred_check_branch
      %30 = sbr.rel (0) target = $region21
    $region20: #{tpu_custom_call.1} parent=1 // pred_region
      _
    $region21: #{tpu_custom_call.1} parent=1 // pred_fallthru
      _
    // Predicated region
    $region22: #{tpu_custom_call.1} parent=1 // pred_check
      _
    $region23: #{tpu_custom_call.1} parent=1 // pred_check_branch
      %32 = sbr.rel (0) target = $region25
    $region24: #{tpu_custom_call.1} parent=1 // pred_region
      _
    $region25: #{tpu_custom_call.1} parent=1 // pred_fallthru
      _
    // Predicated region
    $region26: #{tpu_custom_call.1} parent=1 // pred_check
      _
    $region27: #{tpu_custom_call.1} parent=1 // pred_check_branch
      %34 = sbr.rel (0) target = $region29
    $region28: #{tpu_custom_call.1} parent=1 // pred_region
      _
    $region29: #{tpu_custom_call.1} parent=1 // pred_fallthru
      _
    // Predicated region
    $region30: #{tpu_custom_call.1} parent=1 // pred_check
      _
    $region31: #{tpu_custom_call.1} parent=1 // pred_check_branch
      %36 = sbr.rel (0) target = $region33
    $region32: #{tpu_custom_call.1} parent=1 // pred_region
      _
    $region33: #{tpu_custom_call.1} parent=1 // pred_fallthru
      _
    // Predicated region
    $region34: #{tpu_custom_call.1} parent=1 // pred_check
      _
    $region35: #{tpu_custom_call.1} parent=1 // pred_check_branch
      %38 = sbr.rel (0) target = $region37
    $region36: #{tpu_custom_call.1} parent=1 // pred_region
      _
    $region37: #{tpu_custom_call.1} parent=1 // pred_fallthru
      _
    // Predicated region
    $region38: #{tpu_custom_call.1} parent=1 // pred_check
      _
    $region39: #{tpu_custom_call.1} parent=1 // pred_check_branch
      %40 = sbr.rel (0) target = $region41
    $region40: #{tpu_custom_call.1} parent=1 // pred_region
      _
    $region41: #{tpu_custom_call.1} parent=1 // pred_fallthru
      _
    // Predicated region
    $region42: #{tpu_custom_call.1} parent=1 // pred_check
      _
    $region43: #{tpu_custom_call.1} parent=1 // pred_check_branch
      %42 = sbr.rel (0) target = $region45
    $region44: #{tpu_custom_call.1} parent=1 // pred_region
      _
    $region45: #{tpu_custom_call.1} parent=1 // pred_fallthru
      _
    %v43 = vld [vmem:[%s0] sm:$0x3]
    %v44 = vld [vmem:[%s1] sm:$0x3]
    %v45 = vld [vmem:[%s2] sm:$0xff]
    %v46 = vld [vmem:[%s2 + $0x8] sm:$0x3]
    %v48 = vlaneseq
    %v49 = vshrl.u32 %v48, 7
    %v50 = vsub.s32 0, %v49
    %v51 = vrot.slane %v43, %v50
    %v52 = vlaneseq
    %v53 = vshrl.u32 %v52, 7
    %v54 = vsub.s32 1, %v53
    %v55 = vrot.slane %v43, %v54
    %59 = vset.pattern.permute.xlu0 0
    %60 = vperm.xlu0 %59, %v45
    %v61 = vpop.permute.xlu0 %60
    %64 = vset.pattern.permute.xlu0 0
    %65 = vperm.xlu0 %64, %v46
    %v66 = vpop.permute.xlu0 %65
    %v68 = vmul.f32 %v51, %v61
    %v69 = vmul.f32 %v55, %v61
    %v70 = vmul.f32 %v51, %v66
    %v71 = vmul.f32 %v55, %v66
    %v72 = vld [vmem:[%s3] sm:$0xff]
    %v73 = vld [vmem:[%s3 + $0x8] sm:$0x3]
    %v75 = vlaneseq
    %v76 = vshrl.u32 %v75, 7
    %v77 = vsub.s32 0, %v76
    %v78 = vrot.slane %v44, %v77
    %v79 = vlaneseq
    %v80 = vshrl.u32 %v79, 7
    %v81 = vsub.s32 1, %v80
    %v82 = vrot.slane %v44, %v81
    %86 = vset.pattern.permute.xlu0 0
    %87 = vperm.xlu0 %86, %v72
    %v88 = vpop.permute.xlu0 %87
    %91 = vset.pattern.permute.xlu0 0
    %92 = vperm.xlu0 %91, %v73
    %v93 = vpop.permute.xlu0 %92
    %v95 = vmul.f32 %v78, %v88
    %v96 = vmul.f32 %v82, %v88
    %v97 = vmul.f32 %v78, %v93
    %v98 = vmul.f32 %v82, %v93
    %v99 = vadd.f32 %v68, %v95
    %v100 = vadd.f32 %v69, %v96
    %v101 = vadd.f32 %v70, %v97
    %v102 = vadd.f32 %v71, %v98
    %v103 = vld [vmem:[%s4] sm:$0xff]
    %v104 = vld [vmem:[%s4 + $0x8] sm:$0x3]
    %106 = vset.pattern.permute.xlu0 0
    %107 = vperm.xlu0 %106, %v103
    %v108 = vpop.permute.xlu0 %107
    %111 = vset.pattern.permute.xlu0 0
    %112 = vperm.xlu0 %111, %v104
    %v113 = vpop.permute.xlu0 %112
    %v115 = vadd.f32 %v99, %v108
    %v116 = vadd.f32 %v100, %v108
    %v117 = vadd.f32 %v101, %v113
    %v118 = vadd.f32 %v102, %v113
    %119 = vst [vmem:[#allocation2] sm:$0xff] %v115
    %120 = vst [vmem:[#allocation2 + $0x8] sm:$0xff] %v116
    %121 = vst [vmem:[#allocation2 + $0x10] sm:$0x3] %v117
    %122 = vst [vmem:[#allocation2 + $0x18] sm:$0x3] %v118
    %v123 = vld [vmem:[%s5] sm:$0xff]
    %v124 = vld [vmem:[%s5 + $0x8] sm:$0x3]
    %126 = vset.pattern.permute.xlu0 0
    %127 = vperm.xlu0 %126, %v123
    %v128 = vpop.permute.xlu0 %127
    %131 = vset.pattern.permute.xlu0 0
    %132 = vperm.xlu0 %131, %v124
    %v133 = vpop.permute.xlu0 %132
    %v135 = vmul.f32 %v51, %v128
    %v136 = vmul.f32 %v55, %v128
    %v137 = vmul.f32 %v51, %v133
    %v138 = vmul.f32 %v55, %v133
    %v139 = vld [vmem:[%s6] sm:$0xff]
    %v140 = vld [vmem:[%s6 + $0x8] sm:$0x3]
    %142 = vset.pattern.permute.xlu0 0
    %143 = vperm.xlu0 %142, %v139
    %v144 = vpop.permute.xlu0 %143
    %147 = vset.pattern.permute.xlu0 0
    %148 = vperm.xlu0 %147, %v140
    %v149 = vpop.permute.xlu0 %148
    %v151 = vmul.f32 %v78, %v144
    %v152 = vmul.f32 %v82, %v144
    %v153 = vmul.f32 %v78, %v149
    %v154 = vmul.f32 %v82, %v149
    %v155 = vadd.f32 %v135, %v151
    %v156 = vadd.f32 %v136, %v152
    %v157 = vadd.f32 %v137, %v153
    %v158 = vadd.f32 %v138, %v154
    %v159 = vld [vmem:[%s7] sm:$0xff]
    %v160 = vld [vmem:[%s7 + $0x8] sm:$0x3]
    %162 = vset.pattern.permute.xlu0 0
    %163 = vperm.xlu0 %162, %v159
    %v164 = vpop.permute.xlu0 %163
    %167 = vset.pattern.permute.xlu0 0
    %168 = vperm.xlu0 %167, %v160
    %v169 = vpop.permute.xlu0 %168
    %v171 = vadd.f32 %v155, %v164
    %v172 = vadd.f32 %v156, %v164
    %v173 = vadd.f32 %v157, %v169
    %v174 = vadd.f32 %v158, %v169
    %v175 = vmul.f32 %v171, 1.442695
    %v176 = vpow.pop %v175
    %v177 = vmul.f32 %v172, 1.442695
    %v178 = vpow.pop %v177
    %v179 = vmul.f32 %v173, 1.442695
    %v180 = vpow.pop %v179
    %v181 = vmul.f32 %v174, 1.442695
    %v182 = vpow.pop %v181
    %183 = vst [vmem:[#allocation4] sm:$0xff] %v176
    %184 = vst [vmem:[#allocation4 + $0x8] sm:$0xff] %v178
    %185 = vst [vmem:[#allocation4 + $0x10] sm:$0x3] %v180
    %186 = vst [vmem:[#allocation4 + $0x18] sm:$0x3] %v182
    %v187 = vld [vmem:[%s8] sm:$0xff]
    %v188 = vld [vmem:[%s8 + $0x8] sm:$0x3]
    %190 = vset.pattern.permute.xlu0 0
    %191 = vperm.xlu0 %190, %v187
    %v192 = vpop.permute.xlu0 %191
    %195 = vset.pattern.permute.xlu0 0
    %196 = vperm.xlu0 %195, %v188
    %v197 = vpop.permute.xlu0 %196
    %v199 = vmul.f32 %v51, %v192
    %v200 = vmul.f32 %v55, %v192
    %v201 = vmul.f32 %v51, %v197
    %v202 = vmul.f32 %v55, %v197
    %v203 = vld [vmem:[%s9] sm:$0xff]
    %v204 = vld [vmem:[%s9 + $0x8] sm:$0x3]
    %206 = vset.pattern.permute.xlu0 0
    %207 = vperm.xlu0 %206, %v203
    %v208 = vpop.permute.xlu0 %207
    %211 = vset.pattern.permute.xlu0 0
    %212 = vperm.xlu0 %211, %v204
    %v213 = vpop.permute.xlu0 %212
    %v215 = vmul.f32 %v78, %v208
    %v216 = vmul.f32 %v82, %v208
    %v217 = vmul.f32 %v78, %v213
    %v218 = vmul.f32 %v82, %v213
    %v219 = vadd.f32 %v199, %v215
    %v220 = vadd.f32 %v200, %v216
    %v221 = vadd.f32 %v201, %v217
    %v222 = vadd.f32 %v202, %v218
    %v223 = vld [vmem:[%s10] sm:$0xff]
    %v224 = vld [vmem:[%s10 + $0x8] sm:$0x3]
    %226 = vset.pattern.permute.xlu0 0
    %227 = vperm.xlu0 %226, %v223
    %v228 = vpop.permute.xlu0 %227
    %231 = vset.pattern.permute.xlu0 0
    %232 = vperm.xlu0 %231, %v224
    %v233 = vpop.permute.xlu0 %232
    %v235 = vadd.f32 %v219, %v228
    %v236 = vadd.f32 %v220, %v228
    %v237 = vadd.f32 %v221, %v233
    %v238 = vadd.f32 %v222, %v233
    %vm239 = vcmask 1041408
    %v240 = vsel %vm239, %v237, -inf
    %v241 = vmax.f32 %v235, %v240
    %v242 = vrot.slane %v241, 4
    %v243 = vmax.f32 %v241, %v242
    %v244 = vrot.slane %v243, 2
    %v245 = vmax.f32 %v243, %v244
    %v246 = vrot.slane %v245, 1
    %v247 = vmax.f32 %v245, %v246
    %v248 = vsel %vm239, %v238, -inf
    %v249 = vmax.f32 %v236, %v248
    %v250 = vrot.slane %v249, 4
    %v251 = vmax.f32 %v249, %v250
    %v252 = vrot.slane %v251, 2
    %v253 = vmax.f32 %v251, %v252
    %v254 = vrot.slane %v253, 1
    %v255 = vmax.f32 %v253, %v254
    %v256 = vsub.f32 %v235, %v247
    %v257 = vsub.f32 %v236, %v255
    %v258 = vsub.f32 %v237, %v247
    %v259 = vsub.f32 %v238, %v255
    %v260 = vmul.f32 %v256, 1.442695
    %v261 = vpow.pop %v260
    %v262 = vmul.f32 %v257, 1.442695
    %v263 = vpow.pop %v262
    %v264 = vmul.f32 %v258, 1.442695
    %v265 = vpow.pop %v264
    %v266 = vmul.f32 %v259, 1.442695
    %v267 = vpow.pop %v266
    %v268 = vsel %vm239, %v265, 0.0
    %v269 = vadd.f32 %v261, %v268
    %v270 = vrot.slane %v269, 4
    %v271 = vadd.f32 %v269, %v270
    %v272 = vrot.slane %v271, 2
    %v273 = vadd.f32 %v271, %v272
    %v274 = vrot.slane %v273, 1
    %v275 = vadd.f32 %v273, %v274
    %v276 = vsel %vm239, %v267, 0.0
    %v277 = vadd.f32 %v263, %v276
    %v278 = vrot.slane %v277, 4
    %v279 = vadd.f32 %v277, %v278
    %v280 = vrot.slane %v279, 2
    %v281 = vadd.f32 %v279, %v280
    %v282 = vrot.slane %v281, 1
    %v283 = vadd.f32 %v281, %v282
    %v284 = vlog2.pop %v275
    %v285 = vmul.f32 %v284, 0.6931472
    %v286 = vlog2.pop %v283
    %v287 = vmul.f32 %v286, 0.6931472
    %v288 = vsub.f32 %v256, %v285
    %v289 = vsub.f32 %v257, %v287
    %v290 = vsub.f32 %v258, %v285
    %v291 = vsub.f32 %v259, %v287
    %292 = vst [vmem:[#allocation6] sm:$0xff] %v288
    %293 = vst [vmem:[#allocation6 + $0x8] sm:$0xff] %v289
    %294 = vst [vmem:[#allocation6 + $0x10] sm:$0x3] %v290
    %295 = vst [vmem:[#allocation6 + $0x18] sm:$0x3] %v291
    // Predicated region
    $region46: #{tpu_custom_call.1} parent=1 // pred_check
      _
    $region47: #{tpu_custom_call.1} parent=1 // pred_check_branch
      %297 = sbr.rel (0) target = $region49
    $region48: #{tpu_custom_call.1} parent=1 // pred_region
      %s299 = ssub.s32 512, 512
      %300 = vsyncadd [#allocation3], %s299
      %s301 = sshll.u32 [#allocation2], 4
      %s302 = int_to_ptr.vmem [resolvable:$true] %s301
      %307 = dma.vmem_to_hbm [thread:$0]  %s302, 512, %s11, [#allocation3], 256, 256, 16
    $region49: #{tpu_custom_call.1} parent=1 // pred_fallthru
      _
    // Predicated region
    $region50: #{tpu_custom_call.1} parent=1 // pred_check
      _
    $region51: #{tpu_custom_call.1} parent=1 // pred_check_branch
      %309 = sbr.rel (0) target = $region53
    $region52: #{tpu_custom_call.1} parent=1 // pred_region
      %s311 = ssub.s32 512, 512
      %312 = vsyncadd [#allocation5], %s311
      %s313 = sshll.u32 [#allocation4], 4
      %s314 = int_to_ptr.vmem [resolvable:$true] %s313
      %319 = dma.vmem_to_hbm [thread:$0]  %s314, 512, %s12, [#allocation5], 256, 256, 16
    $region53: #{tpu_custom_call.1} parent=1 // pred_fallthru
      _
    // Predicated region
    $region54: #{tpu_custom_call.1} parent=1 // pred_check
      _
    $region55: #{tpu_custom_call.1} parent=1 // pred_check_branch
      %321 = sbr.rel (0) target = $region57
    $region56: #{tpu_custom_call.1} parent=1 // pred_region
      %s323 = ssub.s32 512, 512
      %324 = vsyncadd [#allocation5], %s323
      %s325 = sshll.u32 [#allocation6], 4
      %s326 = int_to_ptr.vmem [resolvable:$true] %s325
      %331 = dma.vmem_to_hbm [thread:$0]  %s326, 512, %s13, [#allocation5], 256, 256, 16
    $region57: #{tpu_custom_call.1} parent=1 // pred_fallthru
      _
    // Predicated region
    $region58: #{tpu_custom_call.1} parent=1 // pred_check
      _
    $region59: #{tpu_custom_call.1} parent=1 // pred_check_branch
      %333 = sbr.rel (0) target = $region61
    $region60: #{tpu_custom_call.1} parent=1 // pred_region
      %334 = dma.done [#allocation3], 512
    $region61: #{tpu_custom_call.1} parent=1 // pred_fallthru
      _
    // Predicated region
    $region62: #{tpu_custom_call.1} parent=1 // pred_check
      _
    $region63: #{tpu_custom_call.1} parent=1 // pred_check_branch
      %336 = sbr.rel (0) target = $region65
    $region64: #{tpu_custom_call.1} parent=1 // pred_region
      %337 = dma.done [#allocation5], 512
    $region65: #{tpu_custom_call.1} parent=1 // pred_fallthru
      _
    // Predicated region
    $region66: #{tpu_custom_call.1} parent=1 // pred_check
      _
    $region67: #{tpu_custom_call.1} parent=1 // pred_check_branch
      %339 = sbr.rel (0) target = $region69
    $region68: #{tpu_custom_call.1} parent=1 // pred_region
      %340 = dma.done [#allocation5], 512
    $region69: #{tpu_custom_call.1} parent=1 // pred_fallthru
      _
    %341 = vsyncpa [#allocation3], 1
    %342 = vsyncpa [#allocation5], 1

</llo_original>
